<compile_context>
chip_gen: v5e
topology: v5e:2x2
jax: 0.10.0
libtpu: 0.0.40
codegen_flags: <defaults>
</compile_context>

<pallas_src>
import math

import jax
import jax.numpy as jnp
import numpy as np
from jax import lax
from jax.experimental import pallas as pl
from jax.experimental.pallas import tpu as pltpu

LN_EPS = 1e-5   # PyTorch nn.LayerNorm default
LANE = 128
SUBLANE = 8


def _round_up(x, m):
    return ((x + m - 1) // m) * m


def _cdiv(a, b):
    return -(-a // b)


def _layernorm(h, gamma, beta):
    # Single-pass variance: E[h^2] - E[h]^2.  The two lane reductions are
    # independent (overlap on the XLUs); eps=1e-5 covers mild cancellation.
    mean = jnp.mean(h, axis=-1, keepdims=True)
    mean_sq = jnp.mean(h * h, axis=-1, keepdims=True)
    var = mean_sq - mean * mean
    return (h - mean) * lax.rsqrt(var + LN_EPS) * gamma + beta


def qrdqn_kernel(x_ref, w1_ref, p1_ref, w2_ref, p2_ref, wv_ref, bv_ref, out_ref):
    # p*_ref layout: row 0 = linear bias, row 1 = LN gamma, row 2 = LN beta.
    w1 = w1_ref[...]
    x = x_ref[...].astype(w1.dtype)            # no-op for f32 weights
    p1 = p1_ref[...]
    h = jnp.dot(x, w1, preferred_element_type=jnp.float32) + p1[0:1, :]
    h = _layernorm(h, p1[1:2, :], p1[2:3, :])
    h = jnp.maximum(h, 0.0)

    w2 = w2_ref[...]
    p2 = p2_ref[...]
    h = jnp.dot(h.astype(w2.dtype), w2, preferred_element_type=jnp.float32) + p2[0:1, :]
    h = _layernorm(h, p2[1:2, :], p2[2:3, :])
    h = jnp.maximum(h, 0.0)

    wv = wv_ref[...]
    v = jnp.dot(h.astype(wv.dtype), wv, preferred_element_type=jnp.float32) + bv_ref[...]
    out_ref[...] = v.astype(out_ref.dtype)


def prepare_params(params, matmul_dtype=jnp.float32):
    """One-time packing/padding, hoisted out of the per-call forward path.

    * per-layer 1-D params (bias, LN gamma, LN beta) packed into one (3, h) operand
    * V head zero-padded to a 128-lane-multiple output width (lane-dense stores)
    * weights optionally stored in bf16 for the MXU (v5e/v6e); LN math stays f32
    """
    w1, b1, g1, be1, w2, b2, g2, be2, wv, bv = params
    ns = wv.shape[1]
    ns_pad = _round_up(ns, LANE)

    p1 = jnp.stack([b1, g1, be1], axis=0).astype(jnp.float32)
    p2 = jnp.stack([b2, g2, be2], axis=0).astype(jnp.float32)

    if ns_pad != ns:
        wv_p = jnp.pad(wv, ((0, 0), (0, ns_pad - ns)))
        bv_p = jnp.pad(bv, (0, ns_pad - ns))
    else:
        wv_p, bv_p = wv, bv
    bv_p = bv_p.reshape(1, ns_pad).astype(jnp.float32)

    return {
        "w1": w1.astype(matmul_dtype),
        "p1": p1,
        "w2": w2.astype(matmul_dtype),
        "p2": p2,
        "wv": wv_p.astype(matmul_dtype),
        "bv": bv_p,
        "num_support": ns,   # static Python int; close over prep when jitting
    }


def qrdqn_forward(x, prep, *, max_batch_tile=1024):
    """x: (B, num_inputs) float32 -> (B, num_support) float32."""
    B, num_inputs = x.shape
    w1, p1, w2, p2, wv_p, bv_p = (
        prep["w1"], prep["p1"], prep["w2"], prep["p2"], prep["wv"], prep["bv"])
    ns = prep["num_support"]
    h0 = w1.shape[1]
    h1 = w2.shape[1]
    ns_pad = wv_p.shape[1]

    # Batch tiling: one big block (grid=(1,)) for small batches.  For large
    # batches choose a tile <= max_batch_tile such that the number of grid
    # steps is EVEN, so dimension_semantics=("parallel",) splits cleanly
    # across both v7x TensorCores (no idle tail); hidden dims stay unpadded so
    # the LayerNorm reduction covers exactly h0/h1 features.
    B_sub = _round_up(B, SUBLANE)
    if B_sub <= max_batch_tile:
        batch_tile = B_sub
        n_steps = 1
    else:
        n_steps = _cdiv(B_sub, max_batch_tile)
        if n_steps % 2:
            n_steps += 1
        batch_tile = _round_up(_cdiv(B_sub, n_steps), SUBLANE)
    B_pad = batch_tile * n_steps
    x_p = x if B_pad == B else jnp.pad(x, ((0, B_pad - B), (0, 0)))

    def rep(shape):
        # Full-array block, replicated (constant block index -> fetched once,
        # never re-DMA'd across grid steps).
        return pl.BlockSpec(shape, lambda i: (0, 0))

    out = pl.pallas_call(
        qrdqn_kernel,
        out_shape=jax.ShapeDtypeStruct((B_pad, ns_pad), jnp.float32),
        grid_spec=pltpu.PrefetchScalarGridSpec(
            num_scalar_prefetch=0,
            grid=(n_steps,),
            in_specs=[
                pl.BlockSpec((batch_tile, num_inputs), lambda i: (i, 0)),  # x
                rep((num_inputs, h0)),   # w1
                rep((3, h0)),            # [b1; g1; be1]
                rep((h0, h1)),           # w2
                rep((3, h1)),            # [b2; g2; be2]
                rep((h1, ns_pad)),       # wv (lane-padded)
                rep((1, ns_pad)),        # bv (lane-padded)
            ],
            out_specs=pl.BlockSpec((batch_tile, ns_pad), lambda i: (i, 0)),
        ),
        compiler_params=pltpu.CompilerParams(
            dimension_semantics=("parallel",),
            vmem_limit_bytes=32 * 1024 * 1024,  # explicit budget (v7x-safe)
        ),
    )(x_p, w1, p1, w2, p2, wv_p, bv_p)

    # Skip the slice copy entirely when nothing was padded.
    if B_pad == B and ns_pad == ns:
        return out
    return out[:B, :ns]


def init_params(key, num_inputs, hidden_size, num_support):
    """Mirror layer_init: orthogonal(std=sqrt(2)) weights, zero bias.
    LayerNorm: gamma=1, beta=0."""
    h0, h1 = hidden_size
    ortho = jax.nn.initializers.orthogonal(scale=math.sqrt(2.0))
    k1, k2, k3 = jax.random.split(key, 3)
    w1 = ortho(k1, (num_inputs, h0), jnp.float32)
    w2 = ortho(k2, (h0, h1), jnp.float32)
    wv = ortho(k3, (h1, num_support), jnp.float32)
    b1 = jnp.zeros((h0,), jnp.float32)
    b2 = jnp.zeros((h1,), jnp.float32)
    bv = jnp.zeros((num_support,), jnp.float32)
    g1 = jnp.ones((h0,), jnp.float32)
    be1 = jnp.zeros((h0,), jnp.float32)
    g2 = jnp.ones((h1,), jnp.float32)
    be2 = jnp.zeros((h2 := h1,), jnp.float32)
    return (w1, b1, g1, be1, w2, b2, g2, be2, wv, bv)


def _layernorm_ref(h, gamma, beta):
    # PyTorch-style two-pass biased variance (kept as an independent baseline).
    mean = jnp.mean(h, axis=-1, keepdims=True)
    var = jnp.mean((h - mean) ** 2, axis=-1, keepdims=True)
    return (h - mean) * lax.rsqrt(var + LN_EPS) * gamma + beta


def reference_forward(x, params):
    w1, b1, g1, be1, w2, b2, g2, be2, wv, bv = params
    h = x @ w1 + b1
    h = _layernorm_ref(h, g1, be1)
    h = jnp.maximum(h, 0.0)
    h = h @ w2 + b2
    h = _layernorm_ref(h, g2, be2)
    h = jnp.maximum(h, 0.0)
    return h @ wv + bv


if __name__ == "__main__":
    num_inputs = 32
    hidden_size = (64, 64)
    num_support = 32

    key = jax.random.PRNGKey(0)
    k_param, k_x1, k_x2 = jax.random.split(key, 3)
    params = init_params(k_param, num_inputs, hidden_size, num_support)

    # ---- small batch: single grid step, f32 MXU path ----
    prep_f32 = prepare_params(params)                       # one-time pack/pad
    fwd_f32 = jax.jit(lambda xx: qrdqn_forward(xx, prep_f32))

    x_small = jax.random.normal(k_x1, (16, num_inputs), dtype=jnp.float32)
    out_small = jax.block_until_ready(fwd_f32(x_small))
    ref_small = reference_forward(x_small, params)
    np.testing.assert_allclose(np.asarray(out_small), np.asarray(ref_small),
                               rtol=1e-4, atol=1e-4)

    # ---- larger batch: forces an even, >=2-step grid (both v7x TCs) ----
    x_big = jax.random.normal(k_x2, (300, num_inputs), dtype=jnp.float32)
    fwd_big = jax.jit(lambda xx: qrdqn_forward(xx, prep_f32, max_batch_tile=128))
    out_big = jax.block_until_ready(fwd_big(x_big))
    ref_big = reference_forward(x_big, params)
    np.testing.assert_allclose(np.asarray(out_big), np.asarray(ref_big),
                               rtol=1e-4, atol=1e-4)

    # ---- bf16 MXU operands (v5e/v6e fast path); LayerNorm math stays f32 ----
    prep_bf16 = prepare_params(params, matmul_dtype=jnp.bfloat16)
    fwd_bf16 = jax.jit(lambda xx: qrdqn_forward(xx, prep_bf16))
    out_bf16 = jax.block_until_ready(fwd_bf16(x_small))
    np.testing.assert_allclose(np.asarray(out_bf16), np.asarray(ref_small),
                               rtol=5e-2, atol=2e-1)

    print("KERNEL_OK")
</pallas_src>

<mosaic_0001>
module attributes {stable_mosaic.version = 11 : i64} {
  func.func @qrdqn_kernel(%arg0: i32, %arg1: memref<16x32xf32, #tpu.memory_space<vmem>>, %arg2: memref<32x64xf32, #tpu.memory_space<vmem>>, %arg3: memref<3x64xf32, #tpu.memory_space<vmem>>, %arg4: memref<64x64xf32, #tpu.memory_space<vmem>>, %arg5: memref<3x64xf32, #tpu.memory_space<vmem>>, %arg6: memref<64x128xf32, #tpu.memory_space<vmem>>, %arg7: memref<1x128xf32, #tpu.memory_space<vmem>>, %arg8: memref<16x128xf32, #tpu.memory_space<vmem>>) attributes {dimension_semantics = [#tpu.dimension_semantics<parallel>], iteration_bounds = array<i64: 1>, scalar_prefetch = 0 : i64, scratch_operands = 0 : i64, tpu.core_type = #tpu.core_type<tc>, window_params = [{transform_indices = @transform_0, window_bounds = array<i64: 16, 32>}, {pipeline_mode = #tpu.pipeline_mode<synchronous>, transform_indices = @transform_1, window_bounds = array<i64: 32, 64>}, {pipeline_mode = #tpu.pipeline_mode<synchronous>, transform_indices = @transform_2, window_bounds = array<i64: 3, 64>}, {pipeline_mode = #tpu.pipeline_mode<synchronous>, transform_indices = @transform_3, window_bounds = array<i64: 64, 64>}, {pipeline_mode = #tpu.pipeline_mode<synchronous>, transform_indices = @transform_4, window_bounds = array<i64: 3, 64>}, {pipeline_mode = #tpu.pipeline_mode<synchronous>, transform_indices = @transform_5, window_bounds = array<i64: 64, 128>}, {pipeline_mode = #tpu.pipeline_mode<synchronous>, transform_indices = @transform_6, window_bounds = array<i64: 1, 128>}, {transform_indices = @transform_7, window_bounds = array<i64: 16, 128>}]} {
    %c0 = arith.constant 0 : index
    %c0_0 = arith.constant 0 : index
    %0 = vector.load %arg2[%c0, %c0_0] : memref<32x64xf32, #tpu.memory_space<vmem>>, vector<32x64xf32>
    %c0_1 = arith.constant 0 : index
    %c0_2 = arith.constant 0 : index
    %1 = vector.load %arg1[%c0_1, %c0_2] : memref<16x32xf32, #tpu.memory_space<vmem>>, vector<16x32xf32>
    %c0_3 = arith.constant 0 : index
    %c0_4 = arith.constant 0 : index
    %2 = vector.load %arg3[%c0_3, %c0_4] : memref<3x64xf32, #tpu.memory_space<vmem>>, vector<3x64xf32>
    %cst = arith.constant dense<0.000000e+00> : vector<16x64xf32>
    %3 = tpu.matmul %1, %0, %cst {dimension_numbers = #tpu.dot_dimension_numbers<[1], [0], [0], [1], [0, 0, 1, 1], [], []>} : vector<16x32xf32>, vector<32x64xf32>, vector<16x64xf32> -> vector<16x64xf32>
    %4 = vector.extract_strided_slice %2 {offsets = [0, 0], sizes = [1, 64], strides = [1, 1]} : vector<3x64xf32> to vector<1x64xf32>
    %5 = vector.broadcast %4 : vector<1x64xf32> to vector<16x64xf32>
    %6 = arith.addf %3, %5 : vector<16x64xf32>
    %7 = vector.extract_strided_slice %2 {offsets = [1, 0], sizes = [1, 64], strides = [1, 1]} : vector<3x64xf32> to vector<1x64xf32>
    %8 = vector.extract_strided_slice %2 {offsets = [2, 0], sizes = [1, 64], strides = [1, 1]} : vector<3x64xf32> to vector<1x64xf32>
    %cst_5 = arith.constant dense<0.000000e+00> : vector<16xf32>
    %9 = vector.multi_reduction <add>, %6, %cst_5 [1] : vector<16x64xf32> to vector<16xf32>
    %10 = vector.shape_cast %9 : vector<16xf32> to vector<16x1xf32>
    %cst_6 = arith.constant 6.400000e+01 : f32
    %11 = vector.broadcast %cst_6 : f32 to vector<16x1xf32>
    %12 = arith.divf %10, %11 : vector<16x1xf32>
    %13 = arith.mulf %6, %6 : vector<16x64xf32>
    %cst_7 = arith.constant dense<0.000000e+00> : vector<16xf32>
    %14 = vector.multi_reduction <add>, %13, %cst_7 [1] : vector<16x64xf32> to vector<16xf32>
    %15 = vector.shape_cast %14 : vector<16xf32> to vector<16x1xf32>
    %cst_8 = arith.constant 6.400000e+01 : f32
    %16 = vector.broadcast %cst_8 : f32 to vector<16x1xf32>
    %17 = arith.divf %15, %16 : vector<16x1xf32>
    %18 = arith.mulf %12, %12 : vector<16x1xf32>
    %19 = arith.subf %17, %18 : vector<16x1xf32>
    %20 = vector.broadcast %12 : vector<16x1xf32> to vector<16x64xf32>
    %21 = arith.subf %6, %20 : vector<16x64xf32>
    %cst_9 = arith.constant 9.99999974E-6 : f32
    %22 = vector.broadcast %cst_9 : f32 to vector<16x1xf32>
    %23 = arith.addf %19, %22 : vector<16x1xf32>
    %24 = math.rsqrt %23 : vector<16x1xf32>
    %25 = vector.broadcast %24 : vector<16x1xf32> to vector<16x64xf32>
    %26 = arith.mulf %21, %25 : vector<16x64xf32>
    %27 = vector.broadcast %7 : vector<1x64xf32> to vector<16x64xf32>
    %28 = arith.mulf %26, %27 : vector<16x64xf32>
    %29 = vector.broadcast %8 : vector<1x64xf32> to vector<16x64xf32>
    %30 = arith.addf %28, %29 : vector<16x64xf32>
    %cst_10 = arith.constant 0.000000e+00 : f32
    %31 = vector.broadcast %cst_10 : f32 to vector<16x64xf32>
    %32 = arith.maximumf %30, %31 : vector<16x64xf32>
    %c0_11 = arith.constant 0 : index
    %c0_12 = arith.constant 0 : index
    %33 = vector.load %arg4[%c0_11, %c0_12] : memref<64x64xf32, #tpu.memory_space<vmem>>, vector<64x64xf32>
    %c0_13 = arith.constant 0 : index
    %c0_14 = arith.constant 0 : index
    %34 = vector.load %arg5[%c0_13, %c0_14] : memref<3x64xf32, #tpu.memory_space<vmem>>, vector<3x64xf32>
    %cst_15 = arith.constant dense<0.000000e+00> : vector<16x64xf32>
    %35 = tpu.matmul %32, %33, %cst_15 {dimension_numbers = #tpu.dot_dimension_numbers<[1], [0], [0], [1], [0, 0, 1, 1], [], []>} : vector<16x64xf32>, vector<64x64xf32>, vector<16x64xf32> -> vector<16x64xf32>
    %36 = vector.extract_strided_slice %34 {offsets = [0, 0], sizes = [1, 64], strides = [1, 1]} : vector<3x64xf32> to vector<1x64xf32>
    %37 = vector.broadcast %36 : vector<1x64xf32> to vector<16x64xf32>
    %38 = arith.addf %35, %37 : vector<16x64xf32>
    %39 = vector.extract_strided_slice %34 {offsets = [1, 0], sizes = [1, 64], strides = [1, 1]} : vector<3x64xf32> to vector<1x64xf32>
    %40 = vector.extract_strided_slice %34 {offsets = [2, 0], sizes = [1, 64], strides = [1, 1]} : vector<3x64xf32> to vector<1x64xf32>
    %cst_16 = arith.constant dense<0.000000e+00> : vector<16xf32>
    %41 = vector.multi_reduction <add>, %38, %cst_16 [1] : vector<16x64xf32> to vector<16xf32>
    %42 = vector.shape_cast %41 : vector<16xf32> to vector<16x1xf32>
    %cst_17 = arith.constant 6.400000e+01 : f32
    %43 = vector.broadcast %cst_17 : f32 to vector<16x1xf32>
    %44 = arith.divf %42, %43 : vector<16x1xf32>
    %45 = arith.mulf %38, %38 : vector<16x64xf32>
    %cst_18 = arith.constant dense<0.000000e+00> : vector<16xf32>
    %46 = vector.multi_reduction <add>, %45, %cst_18 [1] : vector<16x64xf32> to vector<16xf32>
    %47 = vector.shape_cast %46 : vector<16xf32> to vector<16x1xf32>
    %cst_19 = arith.constant 6.400000e+01 : f32
    %48 = vector.broadcast %cst_19 : f32 to vector<16x1xf32>
    %49 = arith.divf %47, %48 : vector<16x1xf32>
    %50 = arith.mulf %44, %44 : vector<16x1xf32>
    %51 = arith.subf %49, %50 : vector<16x1xf32>
    %52 = vector.broadcast %44 : vector<16x1xf32> to vector<16x64xf32>
    %53 = arith.subf %38, %52 : vector<16x64xf32>
    %cst_20 = arith.constant 9.99999974E-6 : f32
    %54 = vector.broadcast %cst_20 : f32 to vector<16x1xf32>
    %55 = arith.addf %51, %54 : vector<16x1xf32>
    %56 = math.rsqrt %55 : vector<16x1xf32>
    %57 = vector.broadcast %56 : vector<16x1xf32> to vector<16x64xf32>
    %58 = arith.mulf %53, %57 : vector<16x64xf32>
    %59 = vector.broadcast %39 : vector<1x64xf32> to vector<16x64xf32>
    %60 = arith.mulf %58, %59 : vector<16x64xf32>
    %61 = vector.broadcast %40 : vector<1x64xf32> to vector<16x64xf32>
    %62 = arith.addf %60, %61 : vector<16x64xf32>
    %cst_21 = arith.constant 0.000000e+00 : f32
    %63 = vector.broadcast %cst_21 : f32 to vector<16x64xf32>
    %64 = arith.maximumf %62, %63 : vector<16x64xf32>
    %c0_22 = arith.constant 0 : index
    %c0_23 = arith.constant 0 : index
    %65 = vector.load %arg6[%c0_22, %c0_23] : memref<64x128xf32, #tpu.memory_space<vmem>>, vector<64x128xf32>
    %cst_24 = arith.constant dense<0.000000e+00> : vector<16x128xf32>
    %66 = tpu.matmul %64, %65, %cst_24 {dimension_numbers = #tpu.dot_dimension_numbers<[1], [0], [0], [1], [0, 0, 1, 1], [], []>} : vector<16x64xf32>, vector<64x128xf32>, vector<16x128xf32> -> vector<16x128xf32>
    %c0_25 = arith.constant 0 : index
    %c0_26 = arith.constant 0 : index
    %67 = vector.load %arg7[%c0_25, %c0_26] : memref<1x128xf32, #tpu.memory_space<vmem>>, vector<1x128xf32>
    %68 = vector.broadcast %67 : vector<1x128xf32> to vector<16x128xf32>
    %69 = arith.addf %66, %68 : vector<16x128xf32>
    %c0_27 = arith.constant 0 : index
    %c0_28 = arith.constant 0 : index
    %70 = vector.load %arg8[%c0_27, %c0_28] : memref<16x128xf32, #tpu.memory_space<vmem>>, vector<16x128xf32>
    tpu.vector_store %arg8[%c0_27, %c0_28], %69 {strides = array<i32>} : memref<16x128xf32, #tpu.memory_space<vmem>>, vector<16x128xf32>,
    return
  }
  func.func @transform_0(%arg0: i32) -> (i32, i32) {
    %c0_i32 = arith.constant 0 : i32
    %c0_i32_0 = arith.constant 0 : i32
    return %arg0, %c0_i32 : i32, i32
  }
  func.func @transform_1(%arg0: i32) -> (i32, i32) {
    %c0_i32 = arith.constant 0 : i32
    %c0_i32_0 = arith.constant 0 : i32
    %c0_i32_1 = arith.constant 0 : i32
    return %c0_i32, %c0_i32_0 : i32, i32
  }
  func.func @transform_2(%arg0: i32) -> (i32, i32) {
    %c0_i32 = arith.constant 0 : i32
    %c0_i32_0 = arith.constant 0 : i32
    %c0_i32_1 = arith.constant 0 : i32
    return %c0_i32, %c0_i32_0 : i32, i32
  }
  func.func @transform_3(%arg0: i32) -> (i32, i32) {
    %c0_i32 = arith.constant 0 : i32
    %c0_i32_0 = arith.constant 0 : i32
    %c0_i32_1 = arith.constant 0 : i32
    return %c0_i32, %c0_i32_0 : i32, i32
  }
  func.func @transform_4(%arg0: i32) -> (i32, i32) {
    %c0_i32 = arith.constant 0 : i32
    %c0_i32_0 = arith.constant 0 : i32
    %c0_i32_1 = arith.constant 0 : i32
    return %c0_i32, %c0_i32_0 : i32, i32
  }
  func.func @transform_5(%arg0: i32) -> (i32, i32) {
    %c0_i32 = arith.constant 0 : i32
    %c0_i32_0 = arith.constant 0 : i32
    %c0_i32_1 = arith.constant 0 : i32
    return %c0_i32, %c0_i32_0 : i32, i32
  }
  func.func @transform_6(%arg0: i32) -> (i32, i32) {
    %c0_i32 = arith.constant 0 : i32
    %c0_i32_0 = arith.constant 0 : i32
    %c0_i32_1 = arith.constant 0 : i32
    return %c0_i32, %c0_i32_0 : i32, i32
  }
  func.func @transform_7(%arg0: i32) -> (i32, i32) {
    %c0_i32 = arith.constant 0 : i32
    %c0_i32_0 = arith.constant 0 : i32
    return %arg0, %c0_i32 : i32, i32
  }
}

</mosaic_0001>

<llo_original>
// kernel: _lambda_.1
$region0: #{_lambda_.1}
  #allocation0 [shape = 'u32[]', space=smem, size = 0x4, offset = 0x4, fixed_abs, tag = 'smem constant byte address 0x4 - core index']
  #allocation1 [shape = 'u32[72,128]{1,0:T(1,128)}', space=vmem, size = 0x9000, scoped, tag = 'internal scratch']
  %s0 = inlined_call_operand.hbm [shape: f32[16,32], index: 0, kind: input, shape index: {}]
  %s1 = inlined_call_operand.hbm [shape: f32[32,64], index: 1, kind: input, shape index: {}]
  %s2 = inlined_call_operand.vmem [shape: f32[3,64], index: 2, kind: input, shape index: {}, may-alias: {2,4}]
  %s3 = inlined_call_operand.hbm [shape: f32[64,64], index: 3, kind: input, shape index: {}]
  %s4 = inlined_call_operand.vmem [shape: f32[3,64], index: 4, kind: input, shape index: {}, may-alias: {2,4}]
  %s5 = inlined_call_operand.hbm [shape: f32[64,128], index: 5, kind: input, shape index: {}]
  %s6 = inlined_call_operand.vmem [shape: f32[1,128], index: 6, kind: input, shape index: {}]
  %s7 = inlined_call_operand.hbm [shape: f32[16,128], index: 7, kind: output, shape index: {}]
  %s8 = sld [smem:[#allocation0]]
  $region54: #{_lambda_.1} parent=0
    _
  %s10 = ssub.s32 1, %s8
  %s11 = scalar_select 0, %s10, %s8
  $region1: #{_lambda_.1} parent=0
    #allocation2 [shape = 'u8[8192]{0}', space=vmem, size = 0x2000, scoped, tag = 'input window, operand 0, single buffered']
    #allocation3 [shape = 's32[1]{0}', space=sflag, size = 0x4, scoped, tag = 'scoped memory for _lambda_.1']
    #allocation4 [shape = 's32[1]{0}', space=sflag, size = 0x4, scoped, tag = 'scoped memory for _lambda_.1']
    #allocation5 [shape = 'u8[16384]{0}', space=vmem, size = 0x4000, scoped, tag = 'input window, operand 1, single buffered']
    #allocation6 [shape = 's32[1]{0}', space=sflag, size = 0x4, scoped, tag = 'scoped memory for _lambda_.1']
    #allocation7 [shape = 'u8[32768]{0}', space=vmem, size = 0x8000, scoped, tag = 'input window, operand 3, single buffered']
    #allocation8 [shape = 'u8[32768]{0}', space=vmem, size = 0x8000, scoped, tag = 'input window, operand 5, single buffered']
    #allocation9 [shape = 's32[1]{0}', space=sflag, size = 0x4, scoped, tag = 'scoped memory for _lambda_.1']
    #allocation10 [shape = 'u8[8192]{0}', space=vmem, size = 0x2000, scoped, tag = 'output window, operand 0, single buffered']
    %12 = vsyncpa [#allocation3], 0
    %13 = vsyncpa [#allocation6], 0
    %14 = vsyncpa [#allocation9], 0
    %15 = vsyncpa [#allocation4], 0
    // Predicated region
    $region2: #{_lambda_.1} parent=1 // pred_check
      _
    $region3: #{_lambda_.1} parent=1 // pred_check_branch
      %17 = sbr.rel (0) target = $region5
    $region4: #{_lambda_.1} parent=1 // pred_region
      %19 = vsyncadd [#allocation3], 0
      %s20 = sshll.u32 %s0, 4
      %s21 = int_to_ptr.hbm [resolvable:$true] %s20
      %s22 = sshll.u32 [#allocation2], 4
      %s23 = int_to_ptr.vmem [resolvable:$true] %s22
      %28 = dma.hbm_to_vmem [thread:$0]  %s21, 256, %s23, [#allocation3], 128, 128, 8
    $region5: #{_lambda_.1} parent=1 // pred_fallthru
      _
    // Predicated region
    $region6: #{_lambda_.1} parent=1 // pred_check
      _
    $region7: #{_lambda_.1} parent=1 // pred_check_branch
      %30 = sbr.rel (0) target = $region9
    $region8: #{_lambda_.1} parent=1 // pred_region
      %32 = vsyncadd [#allocation6], 0
      %s33 = sshll.u32 %s1, 4
      %s34 = int_to_ptr.hbm [resolvable:$true] %s33
      %s35 = sshll.u32 [#allocation5], 4
      %s36 = int_to_ptr.vmem [resolvable:$true] %s35
      %41 = dma.hbm_to_vmem [thread:$0]  %s34, 512, %s36, [#allocation6], 128, 128, 8
    $region9: #{_lambda_.1} parent=1 // pred_fallthru
      _
    // Predicated region
    $region10: #{_lambda_.1} parent=1 // pred_check
      _
    $region11: #{_lambda_.1} parent=1 // pred_check_branch
      %43 = sbr.rel (0) target = $region13
    $region12: #{_lambda_.1} parent=1 // pred_region
      _
    $region13: #{_lambda_.1} parent=1 // pred_fallthru
      _
    // Predicated region
    $region14: #{_lambda_.1} parent=1 // pred_check
      _
    $region15: #{_lambda_.1} parent=1 // pred_check_branch
      %45 = sbr.rel (0) target = $region17
    $region16: #{_lambda_.1} parent=1 // pred_region
      %47 = vsyncadd [#allocation6], 0
      %s48 = sshll.u32 %s3, 4
      %s49 = int_to_ptr.hbm [resolvable:$true] %s48
      %s50 = sshll.u32 [#allocation7], 4
      %s51 = int_to_ptr.vmem [resolvable:$true] %s50
      %56 = dma.hbm_to_vmem [thread:$0]  %s49, 1024, %s51, [#allocation6], 128, 128, 8
    $region17: #{_lambda_.1} parent=1 // pred_fallthru
      _
    // Predicated region
    $region18: #{_lambda_.1} parent=1 // pred_check
      _
    $region19: #{_lambda_.1} parent=1 // pred_check_branch
      %58 = sbr.rel (0) target = $region21
    $region20: #{_lambda_.1} parent=1 // pred_region
      _
    $region21: #{_lambda_.1} parent=1 // pred_fallthru
      _
    // Predicated region
    $region22: #{_lambda_.1} parent=1 // pred_check
      _
    $region23: #{_lambda_.1} parent=1 // pred_check_branch
      %60 = sbr.rel (0) target = $region25
    $region24: #{_lambda_.1} parent=1 // pred_region
      %62 = vsyncadd [#allocation9], 0
      %s63 = sshll.u32 %s5, 4
      %s64 = int_to_ptr.hbm [resolvable:$true] %s63
      %s65 = sshll.u32 [#allocation8], 4
      %s66 = int_to_ptr.vmem [resolvable:$true] %s65
      %71 = dma.hbm_to_vmem [thread:$0]  %s64, 1024, %s66, [#allocation9], 128, 128, 8
    $region25: #{_lambda_.1} parent=1 // pred_fallthru
      _
    // Predicated region
    $region26: #{_lambda_.1} parent=1 // pred_check
      _
    $region27: #{_lambda_.1} parent=1 // pred_check_branch
      %73 = sbr.rel (0) target = $region29
    $region28: #{_lambda_.1} parent=1 // pred_region
      _
    $region29: #{_lambda_.1} parent=1 // pred_fallthru
      _
    // Predicated region
    $region30: #{_lambda_.1} parent=1 // pred_check
      _
    $region31: #{_lambda_.1} parent=1 // pred_check_branch
      %75 = sbr.rel (0) target = $region33
    $region32: #{_lambda_.1} parent=1 // pred_region
      %77 = dma.done [#allocation3], 256
    $region33: #{_lambda_.1} parent=1 // pred_fallthru
      _
    // Predicated region
    $region34: #{_lambda_.1} parent=1 // pred_check
      _
    $region35: #{_lambda_.1} parent=1 // pred_check_branch
      %79 = sbr.rel (0) target = $region37
    $region36: #{_lambda_.1} parent=1 // pred_region
      %81 = dma.done [#allocation6], 512
    $region37: #{_lambda_.1} parent=1 // pred_fallthru
      _
    // Predicated region
    $region38: #{_lambda_.1} parent=1 // pred_check
      _
    $region39: #{_lambda_.1} parent=1 // pred_check_branch
      %83 = sbr.rel (0) target = $region41
    $region40: #{_lambda_.1} parent=1 // pred_region
      %85 = dma.done [#allocation6], 1024
    $region41: #{_lambda_.1} parent=1 // pred_fallthru
      _
    // Predicated region
    $region42: #{_lambda_.1} parent=1 // pred_check
      _
    $region43: #{_lambda_.1} parent=1 // pred_check_branch
      %87 = sbr.rel (0) target = $region45
    $region44: #{_lambda_.1} parent=1 // pred_region
      %89 = dma.done [#allocation9], 1024
    $region45: #{_lambda_.1} parent=1 // pred_fallthru
      _
    %v90 = vld [vmem:[#allocation5] sm:$0xff]
    %v91 = vld [vmem:[#allocation5 + $0x8] sm:$0xff]
    %v92 = vld [vmem:[#allocation5 + $0x10] sm:$0xff]
    %v93 = vld [vmem:[#allocation5 + $0x18] sm:$0xff]
    %v94 = vld [vmem:[#allocation2] sm:$0xff]
    %v95 = vld [vmem:[#allocation2 + $0x8] sm:$0xff]
    %v96 = vld [vmem:[%s2] sm:$0x7]
    %v97 = vperm.slane %v96, 0
    %vm98 = vcmask 261120
    %v100 = vsel %vm98, %v94, 0
    %v103 = vsel %vm98, %v95, 0
    %105 = vmatpush.msra.mxu0 0.0
    %106 = vmatpush.msra.mxu0 0.0
    %107 = vmatpush.msra.mxu0 0.0
    %108 = vmatpush.msra.mxu0 0.0
    %109 = vmatpush.msra.mxu0 0.0
    %110 = vmatpush.msra.mxu0 0.0
    %111 = vmatpush.msra.mxu0 0.0
    %112 = vmatpush.msra.mxu0 0.0
    %113 = vmatpush.msra.mxu0 0.0
    %114 = vmatpush.msra.mxu0 0.0
    %115 = vmatpush.msra.mxu0 0.0
    %116 = vmatpush.msra.mxu0 0.0
    %117 = vmatpush.msra.mxu0 %v93
    %118 = vmatpush.msra.mxu0 %v92
    %119 = vmatpush.msra.mxu0 %v91
    %120 = vmatpush.msra.mxu0 %v90
    %121 = vmatmul.f32.gmra.mxu0 %v100
    %v122 = vpop.f32.mrf.mxu0
    %v123 = vadd.f32 %v97, %v122
    %124 = vmatmul.f32.gmra.mxu0 %v103
    %v125 = vpop.f32.mrf.mxu0
    %v126 = vadd.f32 %v97, %v125
    %127 = vdwg.mxu0
    %vm128 = vcmask 523264
    %v129 = vsel %vm128, %v123, 0.0
    %130 = vadd.xlane.f32.xlu0 %v129
    %v131 = vpop.xlane.xlu0 %130
    %v132 = vsel %vm128, %v126, 0.0
    %133 = vadd.xlane.f32.xlu0 %v132
    %v134 = vpop.xlane.xlu0 %133
    %v135 = vrcp.pop 64.0
    %v136 = vmul.f32 64.0, %v135
    %v137 = vsub.f32 1.0, %v136
    %v138 = vmul.f32 %v135, %v137
    %v139 = vadd.f32 %v135, %v138
    %vm140 = vweird.f32 %v135
    %v141 = vsel %vm140, %v135, %v139
    %v142 = vmul.f32 %v131, %v141
    %v143 = vmul.f32 %v134, %v141
    %v144 = vmul.f32 %v123, %v123
    %v145 = vmul.f32 %v126, %v126
    %v146 = vsel %vm128, %v144, 0.0
    %147 = vadd.xlane.f32.xlu0 %v146
    %v148 = vpop.xlane.xlu0 %147
    %v149 = vsel %vm128, %v145, 0.0
    %150 = vadd.xlane.f32.xlu0 %v149
    %v151 = vpop.xlane.xlu0 %150
    %v152 = vmul.f32 %v148, %v141
    %v153 = vmul.f32 %v151, %v141
    %v154 = vmul.f32 %v142, %v142
    %v155 = vmul.f32 %v143, %v143
    %v156 = vsub.f32 %v152, %v154
    %v157 = vsub.f32 %v153, %v155
    %v158 = vsub.f32 %v123, %v142
    %v159 = vsub.f32 %v126, %v143
    %v160 = vadd.f32 %v156, 1e-05
    %v161 = vadd.f32 %v157, 1e-05
    %v162 = vrsqrt.pop %v160
    %v163 = vmul.f32 %v162, %v160
    %v164 = vmul.f32 %v163, %v162
    %v165 = vmul.f32 0.5, %v164
    %v166 = vsub.f32 1.5, %v165
    %v167 = vmul.f32 %v162, %v166
    %vm168 = vweird.f32 %v160
    %vm169 = vweird.f32 %v162
    %vm170 = vmor %vm168, %vm169
    %v171 = vsel %vm170, %v162, %v167
    %v172 = vrsqrt.pop %v161
    %v173 = vmul.f32 %v172, %v161
    %v174 = vmul.f32 %v173, %v172
    %v175 = vmul.f32 0.5, %v174
    %v176 = vsub.f32 1.5, %v175
    %v177 = vmul.f32 %v172, %v176
    %vm178 = vweird.f32 %v161
    %vm179 = vweird.f32 %v172
    %vm180 = vmor %vm178, %vm179
    %v181 = vsel %vm180, %v172, %v177
    %v182 = vmul.f32 %v158, %v171
    %v183 = vmul.f32 %v159, %v181
    %v184 = vperm.slane %v96, 1
    %v185 = vmul.f32 %v182, %v184
    %v186 = vmul.f32 %v183, %v184
    %v187 = vperm.slane %v96, 2
    %v188 = vadd.f32 %v185, %v187
    %v189 = vadd.f32 %v186, %v187
    %v190 = vmax.f32 %v188, 0.0
    %v191 = vmax.f32 %v189, 0.0
    %v192 = vld [vmem:[#allocation7] sm:$0xff]
    %v193 = vld [vmem:[#allocation7 + $0x8] sm:$0xff]
    %v194 = vld [vmem:[#allocation7 + $0x10] sm:$0xff]
    %v195 = vld [vmem:[#allocation7 + $0x18] sm:$0xff]
    %v196 = vld [vmem:[#allocation7 + $0x20] sm:$0xff]
    %v197 = vld [vmem:[#allocation7 + $0x28] sm:$0xff]
    %v198 = vld [vmem:[#allocation7 + $0x30] sm:$0xff]
    %v199 = vld [vmem:[#allocation7 + $0x38] sm:$0xff]
    %v200 = vld [vmem:[%s4] sm:$0x7]
    %v201 = vperm.slane %v200, 0
    %v203 = vsel %vm128, %v190, 0
    %v206 = vsel %vm128, %v191, 0
    %208 = vmatpush.msra.mxu0 0.0
    %209 = vmatpush.msra.mxu0 0.0
    %210 = vmatpush.msra.mxu0 0.0
    %211 = vmatpush.msra.mxu0 0.0
    %212 = vmatpush.msra.mxu0 0.0
    %213 = vmatpush.msra.mxu0 0.0
    %214 = vmatpush.msra.mxu0 0.0
    %215 = vmatpush.msra.mxu0 0.0
    %216 = vmatpush.msra.mxu0 %v199
    %217 = vmatpush.msra.mxu0 %v198
    %218 = vmatpush.msra.mxu0 %v197
    %219 = vmatpush.msra.mxu0 %v196
    %220 = vmatpush.msra.mxu0 %v195
    %221 = vmatpush.msra.mxu0 %v194
    %222 = vmatpush.msra.mxu0 %v193
    %223 = vmatpush.msra.mxu0 %v192
    %224 = vmatmul.f32.gmra.mxu0 %v203
    %v225 = vpop.f32.mrf.mxu0
    %v226 = vadd.f32 %v201, %v225
    %227 = vmatmul.f32.gmra.mxu0 %v206
    %v228 = vpop.f32.mrf.mxu0
    %v229 = vadd.f32 %v201, %v228
    %230 = vdwg.mxu0
    %v231 = vsel %vm128, %v226, 0.0
    %232 = vadd.xlane.f32.xlu0 %v231
    %v233 = vpop.xlane.xlu0 %232
    %v234 = vsel %vm128, %v229, 0.0
    %235 = vadd.xlane.f32.xlu0 %v234
    %v236 = vpop.xlane.xlu0 %235
    %v237 = vmul.f32 %v233, %v141
    %v238 = vmul.f32 %v236, %v141
    %v239 = vmul.f32 %v226, %v226
    %v240 = vmul.f32 %v229, %v229
    %v241 = vsel %vm128, %v239, 0.0
    %242 = vadd.xlane.f32.xlu0 %v241
    %v243 = vpop.xlane.xlu0 %242
    %v244 = vsel %vm128, %v240, 0.0
    %245 = vadd.xlane.f32.xlu0 %v244
    %v246 = vpop.xlane.xlu0 %245
    %v247 = vmul.f32 %v243, %v141
    %v248 = vmul.f32 %v246, %v141
    %v249 = vmul.f32 %v237, %v237
    %v250 = vmul.f32 %v238, %v238
    %v251 = vsub.f32 %v247, %v249
    %v252 = vsub.f32 %v248, %v250
    %v253 = vsub.f32 %v226, %v237
    %v254 = vsub.f32 %v229, %v238
    %v255 = vadd.f32 %v251, 1e-05
    %v256 = vadd.f32 %v252, 1e-05
    %v257 = vrsqrt.pop %v255
    %v258 = vmul.f32 %v257, %v255
    %v259 = vmul.f32 %v258, %v257
    %v260 = vmul.f32 0.5, %v259
    %v261 = vsub.f32 1.5, %v260
    %v262 = vmul.f32 %v257, %v261
    %vm263 = vweird.f32 %v255
    %vm264 = vweird.f32 %v257
    %vm265 = vmor %vm263, %vm264
    %v266 = vsel %vm265, %v257, %v262
    %v267 = vrsqrt.pop %v256
    %v268 = vmul.f32 %v267, %v256
    %v269 = vmul.f32 %v268, %v267
    %v270 = vmul.f32 0.5, %v269
    %v271 = vsub.f32 1.5, %v270
    %v272 = vmul.f32 %v267, %v271
    %vm273 = vweird.f32 %v256
    %vm274 = vweird.f32 %v267
    %vm275 = vmor %vm273, %vm274
    %v276 = vsel %vm275, %v267, %v272
    %v277 = vmul.f32 %v253, %v266
    %v278 = vmul.f32 %v254, %v276
    %v279 = vperm.slane %v200, 1
    %v280 = vmul.f32 %v277, %v279
    %v281 = vmul.f32 %v278, %v279
    %v282 = vperm.slane %v200, 2
    %v283 = vadd.f32 %v280, %v282
    %v284 = vadd.f32 %v281, %v282
    %v285 = vmax.f32 %v283, 0.0
    %v286 = vmax.f32 %v284, 0.0
    %v287 = vld [vmem:[#allocation8] sm:$0xff]
    %v288 = vld [vmem:[#allocation8 + $0x8] sm:$0xff]
    %v289 = vld [vmem:[#allocation8 + $0x10] sm:$0xff]
    %v290 = vld [vmem:[#allocation8 + $0x18] sm:$0xff]
    %v291 = vld [vmem:[#allocation8 + $0x20] sm:$0xff]
    %v292 = vld [vmem:[#allocation8 + $0x28] sm:$0xff]
    %v293 = vld [vmem:[#allocation8 + $0x30] sm:$0xff]
    %v294 = vld [vmem:[#allocation8 + $0x38] sm:$0xff]
    %v295 = vld [vmem:[%s6] sm:$0x1]
    %v297 = vperm.slane %v295, 0
    %v300 = vsel %vm128, %v285, 0
    %v303 = vsel %vm128, %v286, 0
    %305 = vmatpush.msra.mxu0 0.0
    %306 = vmatpush.msra.mxu0 0.0
    %307 = vmatpush.msra.mxu0 0.0
    %308 = vmatpush.msra.mxu0 0.0
    %309 = vmatpush.msra.mxu0 0.0
    %310 = vmatpush.msra.mxu0 0.0
    %311 = vmatpush.msra.mxu0 0.0
    %312 = vmatpush.msra.mxu0 0.0
    %313 = vmatpush.msra.mxu0 %v294
    %314 = vmatpush.msra.mxu0 %v293
    %315 = vmatpush.msra.mxu0 %v292
    %316 = vmatpush.msra.mxu0 %v291
    %317 = vmatpush.msra.mxu0 %v290
    %318 = vmatpush.msra.mxu0 %v289
    %319 = vmatpush.msra.mxu0 %v288
    %320 = vmatpush.msra.mxu0 %v287
    %321 = vmatmul.f32.gmra.mxu0 %v300
    %v322 = vpop.f32.mrf.mxu0
    %v323 = vadd.f32 %v297, %v322
    %324 = vmatmul.f32.gmra.mxu0 %v303
    %v325 = vpop.f32.mrf.mxu0
    %v326 = vadd.f32 %v297, %v325
    %327 = vdwg.mxu0
    %328 = vst [vmem:[#allocation10] sm:$0xff] %v323
    %329 = vst [vmem:[#allocation10 + $0x8] sm:$0xff] %v326
    // Predicated region
    $region46: #{_lambda_.1} parent=1 // pred_check
      _
    $region47: #{_lambda_.1} parent=1 // pred_check_branch
      %331 = sbr.rel (0) target = $region49
    $region48: #{_lambda_.1} parent=1 // pred_region
      %333 = vsyncadd [#allocation4], 0
      %s334 = sshll.u32 [#allocation10], 4
      %s335 = int_to_ptr.vmem [resolvable:$true] %s334
      %s336 = sshll.u32 %s7, 4
      %s337 = int_to_ptr.hbm [resolvable:$true] %s336
      %342 = dma.vmem_to_hbm [thread:$0]  %s335, 256, %s337, [#allocation4], 128, 128, 8
    $region49: #{_lambda_.1} parent=1 // pred_fallthru
      _
    // Predicated region
    $region50: #{_lambda_.1} parent=1 // pred_check
      _
    $region51: #{_lambda_.1} parent=1 // pred_check_branch
      %344 = sbr.rel (0) target = $region53
    $region52: #{_lambda_.1} parent=1 // pred_region
      %346 = dma.done [#allocation4], 256
    $region53: #{_lambda_.1} parent=1 // pred_fallthru
      _
    %347 = vsyncpa [#allocation3], 1
    %348 = vsyncpa [#allocation6], 1
    %349 = vsyncpa [#allocation9], 1
    %350 = vsyncpa [#allocation4], 1

</llo_original>
